<compile_context>
chip_gen: v7x
topology: tpu7x:2x2x1
jax: 0.10.0
libtpu: 0.0.40
codegen_flags: <defaults>
</compile_context>

<pallas_src>
import numpy as np
import jax
import jax.numpy as jnp
from jax import lax
from jax.experimental import pallas as pl
from jax.experimental.pallas import tpu as pltpu


REL_TILE_CAP = 2048                 # max relation rows per grid step
VMEM_PIPE_BUDGET = 6 * 1024 * 1024  # bytes of double-buffered pipeline traffic


def _round_up(x, m):
    return ((x + m - 1) // m) * m


# ---------------------------------------------------------------------------
# Object head kernel (runs once, tiny): softmax, zero background column,
# foreground max / argmax.  Packed output (N, C+2):
#   lanes [0:C)  = class prob with bg column zeroed  (pred_class_prob)
#   lane  C      = foreground max prob               (scores)
#   lane  C+1    = foreground argmax (as f32)        (pred_classes)
# ---------------------------------------------------------------------------
def _build_obj_kernel(C):
    def kernel(obj_logit_ref, obj_out_ref):
        logits = obj_logit_ref[...].astype(jnp.float32)            # (N, C)
        m = jnp.max(logits, axis=-1, keepdims=True)
        e = jnp.exp(logits - m)
        prob = e / jnp.sum(e, axis=-1, keepdims=True)              # exact softmax
        col = lax.broadcasted_iota(jnp.int32, prob.shape, 1)
        fg = jnp.where(col < C - 1, prob, 0.0)                     # zero bg column
        mx = jnp.max(fg, axis=-1, keepdims=True)                   # (N, 1)
        # first-argmax: mx comes from the same fg array, so float-equality is safe
        pred = jnp.min(jnp.where(fg == mx, col, C), axis=-1, keepdims=True)
        obj_out_ref[:, 0:C] = fg
        obj_out_ref[:, C:C + 1] = mx
        obj_out_ref[:, C + 1:C + 2] = pred.astype(jnp.float32)
    return kernel


# ---------------------------------------------------------------------------
# Relation head kernel (streaming, per row-tile): softmax over all predicates,
# foreground max / argmax.  Packed output (TR, P+2):
#   lanes [0:P)  = full softmax row                  (pred_rel_scores)
#   lane  P      = foreground max prob               (rel_scores)
#   lane  P+1    = foreground argmax (as f32)        (pred_rel_labels)
# ---------------------------------------------------------------------------
def _build_rel_kernel(P):
    def kernel(rel_logit_ref, rel_out_ref):
        logits = rel_logit_ref[...].astype(jnp.float32)            # (TR, P)
        m = jnp.max(logits, axis=-1, keepdims=True)
        e = jnp.exp(logits - m)
        inv = pl.reciprocal(jnp.sum(e, axis=-1, keepdims=True), approx=True)
        prob = e * inv                                             # full softmax
        col = lax.broadcasted_iota(jnp.int32, prob.shape, 1)
        fg = jnp.where(col < P - 1, prob, 0.0)                     # fg predicates
        mx = jnp.max(fg, axis=-1, keepdims=True)                   # (TR, 1)
        rel_cls = jnp.min(jnp.where(fg == mx, col, P), axis=-1, keepdims=True)
        rel_out_ref[:, 0:P] = prob
        rel_out_ref[:, P:P + 1] = mx
        rel_out_ref[:, P + 1:P + 2] = rel_cls.astype(jnp.float32)
    return kernel


# ---------------------------------------------------------------------------
# Wrapper (per image): two pallas_calls + XLA glue (gather, triple score, sort)
# ---------------------------------------------------------------------------
@jax.jit
def postprocess_single_image(obj_logit, rel_logit, rel_pair_idx):
    N, C = obj_logit.shape
    R, P = rel_logit.shape

    # ---------------- object head (single grid step) ----------------
    obj_out = pl.pallas_call(
        _build_obj_kernel(C),
        out_shape=jax.ShapeDtypeStruct((N, C + 2), jnp.float32),
        grid_spec=pltpu.PrefetchScalarGridSpec(
            num_scalar_prefetch=0,
            grid=(1,),
            in_specs=[pl.BlockSpec((N, C), lambda i: (0, 0))],
            out_specs=pl.BlockSpec((N, C + 2), lambda i: (0, 0))),
    )(obj_logit)

    pred_class_prob = obj_out[:, :C]                     # (N, C), bg col zeroed
    obj_scores = obj_out[:, C]                           # (N,)
    obj_pred = obj_out[:, C + 1].astype(jnp.int32)       # (N,)

    # ---------------- relation head (streaming, parallel grid) ------
    # VMEM-budgeted tile: in + out buffers (lane-padded to 128 in VMEM),
    # double-buffered, kept well under the v5e 16 MiB scoped default.
    row_bytes = 4 * (_round_up(P, 128) + _round_up(P + 2, 128))
    tr_budget = (VMEM_PIPE_BUDGET // (2 * row_bytes)) // 8 * 8
    TR = max(8, min(REL_TILE_CAP, tr_budget))
    TR = min(TR, _round_up(R, 8))

    rel_out = pl.pallas_call(
        _build_rel_kernel(P),
        out_shape=jax.ShapeDtypeStruct((R, P + 2), jnp.float32),
        grid_spec=pltpu.PrefetchScalarGridSpec(
            num_scalar_prefetch=0,
            grid=(pl.cdiv(R, TR),),
            in_specs=[pl.BlockSpec((TR, P), lambda r: (r, 0))],
            out_specs=pl.BlockSpec((TR, P + 2), lambda r: (r, 0))),
        compiler_params=pltpu.CompilerParams(
            dimension_semantics=("parallel",)),          # no cross-tile carry
    )(rel_logit)

    rel_prob = rel_out[:, :P]                            # (R, P) full softmax
    rel_scores = rel_out[:, P]                           # (R,)
    rel_class = rel_out[:, P + 1].astype(jnp.int32)      # (R,)

    # ---------------- XLA glue: triple scores + descending sort -----
    s0 = obj_scores[rel_pair_idx[:, 0]]
    s1 = obj_scores[rel_pair_idx[:, 1]]
    triple = rel_scores * s0 * s1
    sorting_idx = jnp.argsort(-triple)

    return {
        "pred_classes": obj_pred,                         # (N,)
        "scores": obj_scores,                             # (N,)
        "pred_class_prob": pred_class_prob,               # (N, C)
        "rel_pair_idxs": rel_pair_idx[sorting_idx],       # (R, 2)
        "pred_rel_scores": rel_prob[sorting_idx],         # (R, P)
        "pred_rel_labels": rel_class[sorting_idx],        # (R,)
        "triple_scores_sorted": triple[sorting_idx],      # (R,)
    }


# ---------------------------------------------------------------------------
# Pure-JAX reference (numerical sanity check)
# ---------------------------------------------------------------------------
def reference_single_image(obj_logit, rel_logit, rel_pair_idx):
    p = jax.nn.softmax(obj_logit, axis=-1)
    p_zero = p.at[:, -1].set(0.0)
    obj_scores = jnp.max(p[:, :-1], axis=1)
    obj_pred = jnp.argmax(p[:, :-1], axis=1)
    rp = jax.nn.softmax(rel_logit, axis=-1)
    rel_scores = jnp.max(rp[:, :-1], axis=1)
    rel_class = jnp.argmax(rp[:, :-1], axis=1)
    s0 = obj_scores[rel_pair_idx[:, 0]]
    s1 = obj_scores[rel_pair_idx[:, 1]]
    triple = rel_scores * s0 * s1
    order = jnp.argsort(-triple)
    return p_zero, obj_scores, obj_pred, rp[order], rel_class[order], triple[order]


if __name__ == "__main__":
    key = jax.random.PRNGKey(0)
    k1, k2, k3 = jax.random.split(key, 3)

    N_OBJ, N_CLS = 8, 9      # 8 proposals, 8 fg classes + 1 background
    N_REL, N_PRED = 16, 7    # 16 relation pairs, 6 fg predicates + 1 background

    obj_logit = jax.random.normal(k1, (N_OBJ, N_CLS), dtype=jnp.float32)
    rel_logit = jax.random.normal(k2, (N_REL, N_PRED), dtype=jnp.float32)
    rel_pair_idx = jax.random.randint(k3, (N_REL, 2), 0, N_OBJ, dtype=jnp.int32)

    out = postprocess_single_image(obj_logit, rel_logit, rel_pair_idx)
    out = jax.tree_util.tree_map(jax.block_until_ready, out)

    # sanity check against pure-JAX reference (loose atol: EUP approx reciprocal
    # on the relation softmax; object head is exact).
    p_ref, s_ref, c_ref, rp_ref, rl_ref, t_ref = reference_single_image(
        obj_logit, rel_logit, rel_pair_idx)
    assert np.allclose(np.asarray(out["pred_class_prob"]), np.asarray(p_ref), atol=5e-3)
    assert np.allclose(np.asarray(out["scores"]), np.asarray(s_ref), atol=5e-3)
    assert np.array_equal(np.asarray(out["pred_classes"]), np.asarray(c_ref))
    assert np.allclose(np.asarray(out["triple_scores_sorted"]), np.asarray(t_ref), atol=5e-3)

    print("KERNEL_OK")
</pallas_src>

<mosaic_0001>
module attributes {stable_mosaic.version = 11 : i64} {
  func.func @kernel(%arg0: i32, %arg1: memref<8x9xf32, #tpu.memory_space<vmem>>, %arg2: memref<8x11xf32, #tpu.memory_space<vmem>>) attributes {dimension_semantics = [#tpu.dimension_semantics<arbitrary>], iteration_bounds = array<i64: 1>, scalar_prefetch = 0 : i64, scratch_operands = 0 : i64, tpu.core_type = #tpu.core_type<tc>, window_params = [{pipeline_mode = #tpu.pipeline_mode<synchronous>, transform_indices = @transform_0, window_bounds = array<i64: 8, 9>}, {pipeline_mode = #tpu.pipeline_mode<synchronous>, transform_indices = @transform_1, window_bounds = array<i64: 8, 11>}]} {
    %c0 = arith.constant 0 : index
    %c0_0 = arith.constant 0 : index
    %0 = vector.load %arg1[%c0, %c0_0] : memref<8x9xf32, #tpu.memory_space<vmem>>, vector<8x9xf32>
    %cst = arith.constant dense<0xFF800000> : vector<8xf32>
    %1 = vector.multi_reduction <maximumf>, %0, %cst [1] : vector<8x9xf32> to vector<8xf32>
    %2 = vector.shape_cast %1 : vector<8xf32> to vector<8x1xf32>
    %3 = vector.broadcast %2 : vector<8x1xf32> to vector<8x9xf32>
    %4 = arith.subf %0, %3 : vector<8x9xf32>
    %5 = math.exp %4 : vector<8x9xf32>
    %cst_1 = arith.constant dense<0.000000e+00> : vector<8xf32>
    %6 = vector.multi_reduction <add>, %5, %cst_1 [1] : vector<8x9xf32> to vector<8xf32>
    %7 = vector.shape_cast %6 : vector<8xf32> to vector<8x1xf32>
    %8 = vector.broadcast %7 : vector<8x1xf32> to vector<8x9xf32>
    %9 = arith.divf %5, %8 : vector<8x9xf32>
    %10 = tpu.iota {dimensions = array<i32: 1>} : vector<8x9xi32>
    %c8_i32 = arith.constant 8 : i32
    %11 = vector.broadcast %c8_i32 : i32 to vector<8x9xi32>
    %12 = arith.cmpi slt, %10, %11 : vector<8x9xi32>
    %cst_2 = arith.constant 0.000000e+00 : f32
    %13 = vector.broadcast %cst_2 : f32 to vector<8x9xf32>
    %14 = arith.select %12, %9, %13 : vector<8x9xi1>, vector<8x9xf32>
    %cst_3 = arith.constant dense<0xFF800000> : vector<8xf32>
    %15 = vector.multi_reduction <maximumf>, %14, %cst_3 [1] : vector<8x9xf32> to vector<8xf32>
    %16 = vector.shape_cast %15 : vector<8xf32> to vector<8x1xf32>
    %17 = vector.broadcast %16 : vector<8x1xf32> to vector<8x9xf32>
    %18 = arith.cmpf oeq, %14, %17 : vector<8x9xf32>
    %c9_i32 = arith.constant 9 : i32
    %19 = vector.broadcast %c9_i32 : i32 to vector<8x9xi32>
    %20 = arith.select %18, %10, %19 : vector<8x9xi1>, vector<8x9xi32>
    %cst_4 = arith.constant dense<2147483647> : vector<8xi32>
    %21 = vector.multi_reduction <minsi>, %20, %cst_4 [1] : vector<8x9xi32> to vector<8xi32>
    %22 = vector.shape_cast %21 : vector<8xi32> to vector<8x1xi32>
    %c0_5 = arith.constant 0 : index
    %c0_6 = arith.constant 0 : index
    %23 = vector.load %arg2[%c0_5, %c0_6] : memref<8x11xf32, #tpu.memory_space<vmem>>, vector<8x9xf32>
    tpu.vector_store %arg2[%c0_5, %c0_6], %14 {strides = array<i32>} : memref<8x11xf32, #tpu.memory_space<vmem>>, vector<8x9xf32>,
    %c0_7 = arith.constant 0 : index
    %c9 = arith.constant 9 : index
    %24 = vector.load %arg2[%c0_7, %c9] : memref<8x11xf32, #tpu.memory_space<vmem>>, vector<8x1xf32>
    tpu.vector_store %arg2[%c0_7, %c9], %16 {strides = array<i32>} : memref<8x11xf32, #tpu.memory_space<vmem>>, vector<8x1xf32>,
    %25 = arith.sitofp %22 : vector<8x1xi32> to vector<8x1xf32>
    %c0_8 = arith.constant 0 : index
    %c10 = arith.constant 10 : index
    %26 = vector.load %arg2[%c0_8, %c10] : memref<8x11xf32, #tpu.memory_space<vmem>>, vector<8x1xf32>
    tpu.vector_store %arg2[%c0_8, %c10], %25 {strides = array<i32>} : memref<8x11xf32, #tpu.memory_space<vmem>>, vector<8x1xf32>,
    return
  }
  func.func @transform_0(%arg0: i32) -> (i32, i32) {
    %c0_i32 = arith.constant 0 : i32
    %c0_i32_0 = arith.constant 0 : i32
    %c0_i32_1 = arith.constant 0 : i32
    return %c0_i32, %c0_i32_0 : i32, i32
  }
  func.func @transform_1(%arg0: i32) -> (i32, i32) {
    %c0_i32 = arith.constant 0 : i32
    %c0_i32_0 = arith.constant 0 : i32
    %c0_i32_1 = arith.constant 0 : i32
    return %c0_i32, %c0_i32_0 : i32, i32
  }
}

module attributes {stable_mosaic.version = 11 : i64} {
  func.func @kernel(%arg0: i32, %arg1: memref<16x7xf32, #tpu.memory_space<vmem>>, %arg2: memref<16x9xf32, #tpu.memory_space<vmem>>) attributes {dimension_semantics = [#tpu.dimension_semantics<parallel>], iteration_bounds = array<i64: 1>, scalar_prefetch = 0 : i64, scratch_operands = 0 : i64, tpu.core_type = #tpu.core_type<tc>, window_params = [{transform_indices = @transform_0, window_bounds = array<i64: 16, 7>}, {transform_indices = @transform_1, window_bounds = array<i64: 16, 9>}]} {
    %c0 = arith.constant 0 : index
    %c0_0 = arith.constant 0 : index
    %0 = vector.load %arg1[%c0, %c0_0] : memref<16x7xf32, #tpu.memory_space<vmem>>, vector<16x7xf32>
    %cst = arith.constant dense<0xFF800000> : vector<16xf32>
    %1 = vector.multi_reduction <maximumf>, %0, %cst [1] : vector<16x7xf32> to vector<16xf32>
    %2 = vector.shape_cast %1 : vector<16xf32> to vector<16x1xf32>
    %3 = vector.broadcast %2 : vector<16x1xf32> to vector<16x7xf32>
    %4 = arith.subf %0, %3 : vector<16x7xf32>
    %5 = math.exp %4 : vector<16x7xf32>
    %cst_1 = arith.constant dense<0.000000e+00> : vector<16xf32>
    %6 = vector.multi_reduction <add>, %5, %cst_1 [1] : vector<16x7xf32> to vector<16xf32>
    %7 = vector.shape_cast %6 : vector<16xf32> to vector<16x1xf32>
    %8 = tpu.reciprocal %7 {approx = true} : vector<16x1xf32> -> vector<16x1xf32>
    %9 = vector.broadcast %8 : vector<16x1xf32> to vector<16x7xf32>
    %10 = arith.mulf %5, %9 : vector<16x7xf32>
    %11 = tpu.iota {dimensions = array<i32: 1>} : vector<16x7xi32>
    %c6_i32 = arith.constant 6 : i32
    %12 = vector.broadcast %c6_i32 : i32 to vector<16x7xi32>
    %13 = arith.cmpi slt, %11, %12 : vector<16x7xi32>
    %cst_2 = arith.constant 0.000000e+00 : f32
    %14 = vector.broadcast %cst_2 : f32 to vector<16x7xf32>
    %15 = arith.select %13, %10, %14 : vector<16x7xi1>, vector<16x7xf32>
    %cst_3 = arith.constant dense<0xFF800000> : vector<16xf32>
    %16 = vector.multi_reduction <maximumf>, %15, %cst_3 [1] : vector<16x7xf32> to vector<16xf32>
    %17 = vector.shape_cast %16 : vector<16xf32> to vector<16x1xf32>
    %18 = vector.broadcast %17 : vector<16x1xf32> to vector<16x7xf32>
    %19 = arith.cmpf oeq, %15, %18 : vector<16x7xf32>
    %c7_i32 = arith.constant 7 : i32
    %20 = vector.broadcast %c7_i32 : i32 to vector<16x7xi32>
    %21 = arith.select %19, %11, %20 : vector<16x7xi1>, vector<16x7xi32>
    %cst_4 = arith.constant dense<2147483647> : vector<16xi32>
    %22 = vector.multi_reduction <minsi>, %21, %cst_4 [1] : vector<16x7xi32> to vector<16xi32>
    %23 = vector.shape_cast %22 : vector<16xi32> to vector<16x1xi32>
    %c0_5 = arith.constant 0 : index
    %c0_6 = arith.constant 0 : index
    %24 = vector.load %arg2[%c0_5, %c0_6] : memref<16x9xf32, #tpu.memory_space<vmem>>, vector<16x7xf32>
    tpu.vector_store %arg2[%c0_5, %c0_6], %10 {strides = array<i32>} : memref<16x9xf32, #tpu.memory_space<vmem>>, vector<16x7xf32>,
    %c0_7 = arith.constant 0 : index
    %c7 = arith.constant 7 : index
    %25 = vector.load %arg2[%c0_7, %c7] : memref<16x9xf32, #tpu.memory_space<vmem>>, vector<16x1xf32>
    tpu.vector_store %arg2[%c0_7, %c7], %17 {strides = array<i32>} : memref<16x9xf32, #tpu.memory_space<vmem>>, vector<16x1xf32>,
    %26 = arith.sitofp %23 : vector<16x1xi32> to vector<16x1xf32>
    %c0_8 = arith.constant 0 : index
    %c8 = arith.constant 8 : index
    %27 = vector.load %arg2[%c0_8, %c8] : memref<16x9xf32, #tpu.memory_space<vmem>>, vector<16x1xf32>
    tpu.vector_store %arg2[%c0_8, %c8], %26 {strides = array<i32>} : memref<16x9xf32, #tpu.memory_space<vmem>>, vector<16x1xf32>,
    return
  }
  func.func @transform_0(%arg0: i32) -> (i32, i32) {
    %c0_i32 = arith.constant 0 : i32
    %c0_i32_0 = arith.constant 0 : i32
    return %arg0, %c0_i32 : i32, i32
  }
  func.func @transform_1(%arg0: i32) -> (i32, i32) {
    %c0_i32 = arith.constant 0 : i32
    %c0_i32_0 = arith.constant 0 : i32
    return %arg0, %c0_i32 : i32, i32
  }
}

</mosaic_0001>

<llo_original>
// kernel: postprocess_single_image.3
$region0: #{postprocess_single_image.3}
  #allocation0 [shape = 'u32[]', space=smem, size = 0x4, offset = 0x4, fixed_abs, tag = 'smem constant byte address 0x4 - core index']
  #allocation1 [shape = 'u32[144,128]{1,0:T(1,128)}', space=vmem, size = 0x12000, scoped, tag = 'internal scratch']
  %s0 = inlined_call_operand.vmem [shape: f32[16,7], index: 0, kind: input, shape index: {}]
  %s1 = inlined_call_operand.vmem [shape: f32[16,9], index: 1, kind: output, shape index: {}]
  %s2 = sld [smem:[#allocation0]]
  $region14: #{postprocess_single_image.3} parent=0
    _
  %s4 = ssub.s32 1, %s2
  %s5 = scalar_select 0, %s4, %s2
  // Predicated region
  $region2: #{postprocess_single_image.3} parent=0 // pred_check
    _
  $region3: #{postprocess_single_image.3} parent=0 // pred_check_branch
    %7 = sbr.rel (0) target = $region5
  $region4: #{postprocess_single_image.3} parent=0 // pred_region
    _
  $region5: #{postprocess_single_image.3} parent=0 // pred_fallthru
    _
  %v8 = vld [vmem:[%s0] sm:$0xff]
  %v9 = vld [vmem:[%s0 + $0x8] sm:$0xff]
  %vm10 = vcmask 56320
  %v11 = vsel %vm10, %v8, -inf
  %12 = vmax.xlane.f32.xlu0 %v11
  %v13 = vpop.xlane.xlu0 %12
  %v14 = vsel %vm10, %v9, -inf
  %15 = vmax.xlane.f32.xlu0 %v14
  %v16 = vpop.xlane.xlu0 %15
  %v17 = vsub.f32 %v8, %v13
  %v18 = vsub.f32 %v9, %v16
  %v19 = vmul.f32 %v17, 1.442695
  %v20 = vpow.pop %v19
  %v21 = vmul.f32 %v18, 1.442695
  %v22 = vpow.pop %v21
  %v23 = vsel %vm10, %v20, 0.0
  %24 = vadd.xlane.f32.xlu0 %v23
  %v25 = vpop.xlane.xlu0 %24
  %v26 = vsel %vm10, %v22, 0.0
  %27 = vadd.xlane.f32.xlu0 %v26
  %v28 = vpop.xlane.xlu0 %27
  %v29 = vrcp.pop %v25
  %v30 = vrcp.pop %v28
  %v31 = vmul.f32 %v20, %v29
  %v32 = vmul.f32 %v22, %v30
  %v33 = vlaneseq
  %v34 = vand.u32 %v33, 127
  %vm35 = vcmp.lt.s32.totalorder %v34, 6
  %v36 = vsel %vm35, %v31, 0.0
  %v37 = vsel %vm35, %v32, 0.0
  %v38 = vsel %vm10, %v36, -inf
  %39 = vmax.xlane.f32.xlu0 %v38
  %v40 = vpop.xlane.xlu0 %39
  %v41 = vsel %vm10, %v37, -inf
  %42 = vmax.xlane.f32.xlu0 %v41
  %v43 = vpop.xlane.xlu0 %42
  %vm44 = vcmp.eq.f32.partialorder %v36, %v40
  %vm45 = vcmp.eq.f32.partialorder %v37, %v43
  %v46 = vsel %vm44, %v34, 7
  %v47 = vsel %vm45, %v34, 7
  %v48 = vsel %vm10, %v46, 2147483647
  %v49 = vand.u32 %v48, 65535
  %v50 = vshra.s32 %v48, 16
  %v51 = vcvt.s32.f32 %v49
  %v52 = vcvt.s32.f32 %v50
  %53 = vmin.xlane.f32.xlu0 %v52
  %v54 = vpop.xlane.xlu0 %53
  %vm55 = vcmp.eq.f32.partialorder %v52, %v54
  %v56 = vsel %vm55, %v51, inf
  %57 = vmin.xlane.f32.xlu0 %v56
  %v58 = vpop.xlane.xlu0 %57
  %v59 = vcvt.f32.s32 %v58
  %v60 = vcvt.f32.s32 %v54
  %v61 = vshll.u32 %v60, 16
  %v62 = vadd.s32 %v61, %v59
  %v63 = vsel %vm10, %v47, 2147483647
  %v64 = vand.u32 %v63, 65535
  %v65 = vshra.s32 %v63, 16
  %v66 = vcvt.s32.f32 %v64
  %v67 = vcvt.s32.f32 %v65
  %68 = vmin.xlane.f32.xlu0 %v67
  %v69 = vpop.xlane.xlu0 %68
  %vm70 = vcmp.eq.f32.partialorder %v67, %v69
  %v71 = vsel %vm70, %v66, inf
  %72 = vmin.xlane.f32.xlu0 %v71
  %v73 = vpop.xlane.xlu0 %72
  %v74 = vcvt.f32.s32 %v73
  %v75 = vcvt.f32.s32 %v69
  %v76 = vshll.u32 %v75, 16
  %v77 = vadd.s32 %v76, %v74
  %78 = vst.msk [vmem:[%s1] sm:$0xff] %vm10, %v31
  %79 = vst.msk [vmem:[%s1 + $0x8] sm:$0xff] %vm10, %v32
  %vm80 = vcmask 64568
  %81 = vst.msk [vmem:[%s1] sm:$0xff] %vm80, %v40
  %82 = vst.msk [vmem:[%s1 + $0x8] sm:$0xff] %vm80, %v43
  %v83 = vcvt.s32.f32 %v62
  %v84 = vcvt.s32.f32 %v77
  %vm85 = vcmask 72768
  %86 = vst.msk [vmem:[%s1] sm:$0xff] %vm85, %v83
  %87 = vst.msk [vmem:[%s1 + $0x8] sm:$0xff] %vm85, %v84
  // Predicated region
  $region6: #{postprocess_single_image.3} parent=0 // pred_check
    _
  $region7: #{postprocess_single_image.3} parent=0 // pred_check_branch
    %89 = sbr.rel (0) target = $region9
  $region8: #{postprocess_single_image.3} parent=0 // pred_region
    _
  $region9: #{postprocess_single_image.3} parent=0 // pred_fallthru
    _
  // Predicated region
  $region10: #{postprocess_single_image.3} parent=0 // pred_check
    _
  $region11: #{postprocess_single_image.3} parent=0 // pred_check_branch
    %91 = sbr.rel (0) target = $region13
  $region12: #{postprocess_single_image.3} parent=0 // pred_region
    _
  $region13: #{postprocess_single_image.3} parent=0 // pred_fallthru
    _

// kernel: postprocess_single_image.2
$region0: #{postprocess_single_image.2}
  #allocation0 [shape = 'u32[]', space=smem, size = 0x4, offset = 0x4, fixed_abs, tag = 'smem constant byte address 0x4 - core index']
  #allocation1 [shape = 'u32[144,128]{1,0:T(1,128)}', space=vmem, size = 0x12000, scoped, tag = 'internal scratch']
  %s0 = inlined_call_operand.hbm [shape: f32[8,9], index: 0, kind: input, shape index: {}]
  %s1 = inlined_call_operand.vmem [shape: f32[8,11], index: 1, kind: output, shape index: {}]
  %s2 = sld [smem:[#allocation0]]
  $region18: #{postprocess_single_image.2} parent=0
    _
  %s4 = ssub.s32 1, %s2
  %s5 = scalar_select 0, %s4, %s2
  $region1: #{postprocess_single_image.2} parent=0
    #allocation2 [shape = 'u8[4096]{0}', space=vmem, size = 0x1000, scoped, tag = 'input window, operand 0, single buffered']
    #allocation3 [shape = 's32[1]{0}', space=sflag, size = 0x4, scoped, tag = 'scoped memory for postprocess_single_image.2']
    %6 = vsyncpa [#allocation3], 0
    // Predicated region
    $region2: #{postprocess_single_image.2} parent=1 // pred_check
      _
    $region3: #{postprocess_single_image.2} parent=1 // pred_check_branch
      %8 = sbr.rel (0) target = $region5
    $region4: #{postprocess_single_image.2} parent=1 // pred_region
      %s10 = ssub.s32 128, 128
      %11 = vsyncadd [#allocation3], %s10
      %s13 = sshll.u32 [#allocation2], 4
      %s14 = int_to_ptr.vmem [resolvable:$true] %s13
      %16 = dma.hbm_to_vmem [thread:$0]  %s0, 128, %s14, [#allocation3]
    $region5: #{postprocess_single_image.2} parent=1 // pred_fallthru
      _
    // Predicated region
    $region6: #{postprocess_single_image.2} parent=1 // pred_check
      _
    $region7: #{postprocess_single_image.2} parent=1 // pred_check_branch
      %18 = sbr.rel (0) target = $region9
    $region8: #{postprocess_single_image.2} parent=1 // pred_region
      %19 = dma.done [#allocation3], 128
    $region9: #{postprocess_single_image.2} parent=1 // pred_fallthru
      _
    %v20 = vld [vmem:[#allocation2] sm:$0xff]
    %vm21 = vcmask 72704
    %v22 = vsel %vm21, %v20, -inf
    %23 = vmax.xlane.f32.xlu0 %v22
    %v24 = vpop.xlane.xlu0 %23
    %v25 = vsub.f32 %v20, %v24
    %v26 = vmul.f32 %v25, 1.442695
    %v27 = vpow.pop %v26
    %v28 = vsel %vm21, %v27, 0.0
    %29 = vadd.xlane.f32.xlu0 %v28
    %v30 = vpop.xlane.xlu0 %29
    %v31 = vrcp.pop %v30
    %v32 = vmul.f32 %v27, %v31
    %v33 = vlaneseq
    %v34 = vand.u32 %v33, 127
    %vm35 = vcmp.lt.s32.totalorder %v34, 8
    %v36 = vsel %vm35, %v32, 0.0
    %v37 = vsel %vm21, %v36, -inf
    %38 = vmax.xlane.f32.xlu0 %v37
    %v39 = vpop.xlane.xlu0 %38
    %vm40 = vcmp.eq.f32.partialorder %v36, %v39
    %v41 = vsel %vm40, %v34, 9
    %v42 = vsel %vm21, %v41, 2147483647
    %v43 = vand.u32 %v42, 65535
    %v44 = vshra.s32 %v42, 16
    %v45 = vcvt.s32.f32 %v43
    %v46 = vcvt.s32.f32 %v44
    %47 = vmin.xlane.f32.xlu0 %v46
    %v48 = vpop.xlane.xlu0 %47
    %vm49 = vcmp.eq.f32.partialorder %v46, %v48
    %v50 = vsel %vm49, %v45, inf
    %51 = vmin.xlane.f32.xlu0 %v50
    %v52 = vpop.xlane.xlu0 %51
    %v53 = vcvt.f32.s32 %v52
    %v54 = vcvt.f32.s32 %v48
    %v55 = vshll.u32 %v54, 16
    %v56 = vadd.s32 %v55, %v53
    %57 = vst.msk [vmem:[%s1] sm:$0xff] %vm21, %v36
    %vm58 = vcmask 80968
    %59 = vst.msk [vmem:[%s1] sm:$0xff] %vm58, %v39
    %v60 = vcvt.s32.f32 %v56
    %vm61 = vcmask 89168
    %62 = vst.msk [vmem:[%s1] sm:$0xff] %vm61, %v60
    // Predicated region
    $region10: #{postprocess_single_image.2} parent=1 // pred_check
      _
    $region11: #{postprocess_single_image.2} parent=1 // pred_check_branch
      %64 = sbr.rel (0) target = $region13
    $region12: #{postprocess_single_image.2} parent=1 // pred_region
      _
    $region13: #{postprocess_single_image.2} parent=1 // pred_fallthru
      _
    // Predicated region
    $region14: #{postprocess_single_image.2} parent=1 // pred_check
      _
    $region15: #{postprocess_single_image.2} parent=1 // pred_check_branch
      %66 = sbr.rel (0) target = $region17
    $region16: #{postprocess_single_image.2} parent=1 // pred_region
      _
    $region17: #{postprocess_single_image.2} parent=1 // pred_fallthru
      _
    %67 = vsyncpa [#allocation3], 1

</llo_original>
